<compile_context>
chip_gen: v6e
topology: v6e:2x2x1
jax: 0.10.0
libtpu: 0.0.40
codegen_flags: <defaults>
</compile_context>

<pallas_src>
import jax
import jax.numpy as jnp
from jax.experimental import pallas as pl
from jax.experimental.pallas import tpu as pltpu


def discriminator_kernel(x_ref, w1_ref, b1_ref, w2_ref, b2_ref, o_ref):
    # x_ref : (bt, D)  native dtype (f32/bf16), streamed over the batch
    # w1_ref: (D, H)   bf16, resident (constant block index)
    # b1_ref: (1, H)   f32, resident
    # w2_ref: (1, H)   f32, resident -- layer-2 weight as a row
    # b2_ref: (1, 1)   f32, resident
    # o_ref : (bt, 1)  f32 probabilities
    x = x_ref[...].astype(w1_ref.dtype)                       # on-chip cast to bf16
    h = jnp.dot(x, w1_ref[...], preferred_element_type=jnp.float32)  # MXU, f32 acc
    h = h + b1_ref[...]
    h = jnp.maximum(h, 0.1 * h)                                # LeakyReLU(0.1)
    # Layer 2 (128 -> 1): sublane-broadcast the w2 row (free), VPU multiply,
    # XLU lane-reduce. No transpose, no extra f32 intermediate copies.
    logits = jnp.sum(h * w2_ref[...], axis=-1, keepdims=True) + b2_ref[...]
    o_ref[...] = jax.nn.sigmoid(logits).astype(o_ref.dtype)


def _round_up(v, m):
    return (v + m - 1) // m * m


def _cdiv(a, b):
    return -(-a // b)


def discriminator_forward(x, w1, b1, w2, b2, *, batch_tile=1024,
                          matmul_dtype=jnp.bfloat16):
    """x: (B, img_dim); w1: (img_dim, 128); b1: (1,128)/(128,);
    w2: (128, 1)/(128,); b2: (1,1)/scalar. Returns (B, 1) f32 probabilities."""
    B, D = x.shape
    Din, H = w1.shape
    assert Din == D

    # Tiny resident operands: cast/reshape once in the wrapper (negligible traffic).
    w1_c = w1.astype(matmul_dtype)
    b1_r = jnp.reshape(b1, (1, H)).astype(jnp.float32)
    w2_r = jnp.reshape(w2, (1, H)).astype(jnp.float32)   # row layout for layer 2
    b2_r = jnp.reshape(b2, (1, 1)).astype(jnp.float32)

    x_itemsize = jnp.dtype(x.dtype).itemsize
    w_itemsize = jnp.dtype(matmul_dtype).itemsize

    # Per-generation VMEM budget (leave ~25% headroom for compiler scratch).
    try:
        vmem_cap = int(pltpu.get_tpu_info().vmem_capacity_bytes)
    except Exception:
        vmem_cap = 64 * 1024 * 1024   # conservative fallback (v7x-sized)
    vmem_budget = (vmem_cap * 3) // 4

    # Resident operands; count Pallas' default double-buffering even though the
    # block index is constant.
    fixed_bytes = 2 * (D * H * w_itemsize + 3 * H * 4)

    def tile_bytes(tb):
        return (2 * tb * D * x_itemsize      # streamed x tile, double-buffered
                + 2 * tb * H * 4             # h / layer-2 f32 intermediates
                + 2 * tb * 4)                # output column, double-buffered

    # Tile choice: amortize the ~0.35us/step overhead, even out the tiles so the
    # trailing tile wastes little bandwidth, keep >= 2 tiles when the batch
    # allows (so both v7x TensorCores get work), and fit the VMEM budget.
    n_tiles = max(1, _cdiv(B, batch_tile))
    if B > 128:
        n_tiles = max(n_tiles, 2)
    bt = _round_up(_cdiv(B, n_tiles), 128)
    while bt > 128 and fixed_bytes + tile_bytes(bt) > vmem_budget:
        bt -= 128
    # TODO(synk): for very large img_dim where even bt=128 overflows the budget,
    # add a K grid axis ("arbitrary") with a (bt, H) f32 accumulator scratch.
    n_tiles = max(1, _cdiv(B, bt))
    b_pad = bt * n_tiles

    # Only a row-pad when the batch does not divide the tile; no column padding
    # and no dtype repack of x in the wrapper.
    x_in = x if b_pad == B else jnp.pad(x, ((0, b_pad - B), (0, 0)))

    vmem_est = fixed_bytes + tile_bytes(bt)
    vmem_limit = int(min(max(vmem_est * 3 // 2, 32 * 1024 * 1024), vmem_budget))

    out = pl.pallas_call(
        discriminator_kernel,
        out_shape=jax.ShapeDtypeStruct((b_pad, 1), jnp.float32),
        grid_spec=pltpu.PrefetchScalarGridSpec(
            num_scalar_prefetch=0,
            grid=(n_tiles,),
            in_specs=[
                pl.BlockSpec((bt, D), lambda i: (i, 0)),   # x: streamed over batch
                pl.BlockSpec((D, H), lambda i: (0, 0)),    # w1: resident
                pl.BlockSpec((1, H), lambda i: (0, 0)),    # b1: resident
                pl.BlockSpec((1, H), lambda i: (0, 0)),    # w2 row: resident
                pl.BlockSpec((1, 1), lambda i: (0, 0)),    # b2: resident
            ],
            out_specs=pl.BlockSpec((bt, 1), lambda i: (i, 0)),
        ),
        compiler_params=pltpu.CompilerParams(
            dimension_semantics=("parallel",),   # batch axis shards across v7x's 2 TCs
            vmem_limit_bytes=vmem_limit,
        ),
    )(x_in, w1_c, b1_r, w2_r, b2_r)

    return out[:B]


def init_params(key, img_dim, hidden=128):
    # PyTorch-nn.Linear-style uniform init U(-1/sqrt(fan_in), 1/sqrt(fan_in)).
    k1, k2, k3, k4 = jax.random.split(key, 4)
    s1 = 1.0 / jnp.sqrt(img_dim)
    s2 = 1.0 / jnp.sqrt(hidden)
    w1 = jax.random.uniform(k1, (img_dim, hidden), jnp.float32, -s1, s1)
    b1 = jax.random.uniform(k2, (1, hidden), jnp.float32, -s1, s1)
    w2 = jax.random.uniform(k3, (hidden, 1), jnp.float32, -s2, s2)
    b2 = jax.random.uniform(k4, (1, 1), jnp.float32, -s2, s2)
    return w1, b1, w2, b2


def _reference(x, w1, b1, w2, b2, matmul_dtype=jnp.bfloat16):
    # Tight reference: same bf16-rounded matmul inputs, f32 math elsewhere.
    xr = x.astype(matmul_dtype).astype(jnp.float32)
    w1r = w1.astype(matmul_dtype).astype(jnp.float32)
    h = xr @ w1r + jnp.reshape(b1, (1, -1))
    h = jnp.where(h > 0, h, 0.1 * h)
    return jax.nn.sigmoid(h @ jnp.reshape(w2, (-1, 1)) + jnp.reshape(b2, (1, 1)))


if __name__ == "__main__":
    key = jax.random.PRNGKey(0)
    # Small, deliberately unaligned shapes to exercise batch padding and the
    # full-feature-dim (non-128-multiple) block path.
    img_dim = 200
    kx1, kx2, kp = jax.random.split(key, 3)
    w1, b1, w2, b2 = init_params(kp, img_dim)

    # Case 1: single-tile batch.
    x1 = jax.random.normal(kx1, (37, img_dim), jnp.float32)
    out1 = jax.block_until_ready(discriminator_forward(x1, w1, b1, w2, b2))
    assert out1.shape == (37, 1)
    assert jnp.allclose(out1, _reference(x1, w1, b1, w2, b2), atol=1e-3, rtol=1e-3)

    # Case 2: multi-tile batch (exercises the >=2-tile / ragged-trailing path).
    x2 = jax.random.normal(kx2, (300, img_dim), jnp.float32)
    out2 = jax.block_until_ready(discriminator_forward(x2, w1, b1, w2, b2))
    assert out2.shape == (300, 1)
    assert jnp.allclose(out2, _reference(x2, w1, b1, w2, b2), atol=1e-3, rtol=1e-3)

    # Loose sanity check against the pure-f32 PyTorch-equivalent forward.
    h32 = x1 @ w1 + b1
    h32 = jnp.where(h32 > 0, h32, 0.1 * h32)
    ref_f32 = jax.nn.sigmoid(h32 @ w2 + b2)
    assert jnp.allclose(out1, ref_f32, atol=2e-2, rtol=2e-2)

    print("KERNEL_OK")
</pallas_src>

<mosaic_0001>
module attributes {stable_mosaic.version = 11 : i64} {
  func.func @discriminator_kernel(%arg0: i32, %arg1: memref<128x200xf32, #tpu.memory_space<vmem>>, %arg2: memref<200x128xbf16, #tpu.memory_space<vmem>>, %arg3: memref<1x128xf32, #tpu.memory_space<vmem>>, %arg4: memref<1x128xf32, #tpu.memory_space<vmem>>, %arg5: memref<1x1xf32, #tpu.memory_space<vmem>>, %arg6: memref<128x1xf32, #tpu.memory_space<vmem>>) attributes {dimension_semantics = [#tpu.dimension_semantics<parallel>], iteration_bounds = array<i64: 1>, scalar_prefetch = 0 : i64, scratch_operands = 0 : i64, tpu.core_type = #tpu.core_type<tc>, window_params = [{transform_indices = @transform_0, window_bounds = array<i64: 128, 200>}, {pipeline_mode = #tpu.pipeline_mode<synchronous>, transform_indices = @transform_1, window_bounds = array<i64: 200, 128>}, {pipeline_mode = #tpu.pipeline_mode<synchronous>, transform_indices = @transform_2, window_bounds = array<i64: 1, 128>}, {pipeline_mode = #tpu.pipeline_mode<synchronous>, transform_indices = @transform_3, window_bounds = array<i64: 1, 128>}, {pipeline_mode = #tpu.pipeline_mode<synchronous>, transform_indices = @transform_4, window_bounds = array<i64: 1, 1>}, {transform_indices = @transform_5, window_bounds = array<i64: 128, 1>}]} {
    %c0 = arith.constant 0 : index
    %c0_0 = arith.constant 0 : index
    %0 = vector.load %arg1[%c0, %c0_0] : memref<128x200xf32, #tpu.memory_space<vmem>>, vector<128x200xf32>
    %1 = arith.truncf %0 : vector<128x200xf32> to vector<128x200xbf16>
    %c0_1 = arith.constant 0 : index
    %c0_2 = arith.constant 0 : index
    %2 = vector.load %arg2[%c0_1, %c0_2] : memref<200x128xbf16, #tpu.memory_space<vmem>>, vector<200x128xbf16>
    %cst = arith.constant dense<0.000000e+00> : vector<128x128xf32>
    %3 = tpu.matmul %1, %2, %cst {dimension_numbers = #tpu.dot_dimension_numbers<[1], [0], [0], [1], [0, 0, 1, 1], [], []>} : vector<128x200xbf16>, vector<200x128xbf16>, vector<128x128xf32> -> vector<128x128xf32>
    %c0_3 = arith.constant 0 : index
    %c0_4 = arith.constant 0 : index
    %4 = vector.load %arg3[%c0_3, %c0_4] : memref<1x128xf32, #tpu.memory_space<vmem>>, vector<1x128xf32>
    %5 = vector.broadcast %4 : vector<1x128xf32> to vector<128x128xf32>
    %6 = arith.addf %3, %5 : vector<128x128xf32>
    %cst_5 = arith.constant 1.000000e-01 : f32
    %7 = vector.broadcast %cst_5 : f32 to vector<128x128xf32>
    %8 = arith.mulf %7, %6 : vector<128x128xf32>
    %9 = arith.maximumf %6, %8 : vector<128x128xf32>
    %c0_6 = arith.constant 0 : index
    %c0_7 = arith.constant 0 : index
    %10 = vector.load %arg4[%c0_6, %c0_7] : memref<1x128xf32, #tpu.memory_space<vmem>>, vector<1x128xf32>
    %11 = vector.broadcast %10 : vector<1x128xf32> to vector<128x128xf32>
    %12 = arith.mulf %9, %11 : vector<128x128xf32>
    %cst_8 = arith.constant dense<0.000000e+00> : vector<128xf32>
    %13 = vector.multi_reduction <add>, %12, %cst_8 [1] : vector<128x128xf32> to vector<128xf32>
    %14 = vector.shape_cast %13 : vector<128xf32> to vector<128x1xf32>
    %c0_9 = arith.constant 0 : index
    %c0_10 = arith.constant 0 : index
    %15 = vector.load %arg5[%c0_9, %c0_10] : memref<1x1xf32, #tpu.memory_space<vmem>>, vector<1x1xf32>
    %16 = vector.broadcast %15 : vector<1x1xf32> to vector<128x1xf32>
    %17 = arith.addf %14, %16 : vector<128x1xf32>
    %18 = arith.negf %17 : vector<128x1xf32>
    %19 = math.exp %18 : vector<128x1xf32>
    %cst_11 = arith.constant 1.000000e+00 : f32
    %20 = vector.broadcast %cst_11 : f32 to vector<128x1xf32>
    %21 = arith.addf %20, %19 : vector<128x1xf32>
    %22 = arith.divf %20, %21 : vector<128x1xf32>
    %c0_12 = arith.constant 0 : index
    %c0_13 = arith.constant 0 : index
    %23 = vector.load %arg6[%c0_12, %c0_13] : memref<128x1xf32, #tpu.memory_space<vmem>>, vector<128x1xf32>
    tpu.vector_store %arg6[%c0_12, %c0_13], %22 {strides = array<i32>} : memref<128x1xf32, #tpu.memory_space<vmem>>, vector<128x1xf32>,
    return
  }
  func.func @transform_0(%arg0: i32) -> (i32, i32) {
    %c0_i32 = arith.constant 0 : i32
    %c0_i32_0 = arith.constant 0 : i32
    return %arg0, %c0_i32 : i32, i32
  }
  func.func @transform_1(%arg0: i32) -> (i32, i32) {
    %c0_i32 = arith.constant 0 : i32
    %c0_i32_0 = arith.constant 0 : i32
    %c0_i32_1 = arith.constant 0 : i32
    return %c0_i32, %c0_i32_0 : i32, i32
  }
  func.func @transform_2(%arg0: i32) -> (i32, i32) {
    %c0_i32 = arith.constant 0 : i32
    %c0_i32_0 = arith.constant 0 : i32
    %c0_i32_1 = arith.constant 0 : i32
    return %c0_i32, %c0_i32_0 : i32, i32
  }
  func.func @transform_3(%arg0: i32) -> (i32, i32) {
    %c0_i32 = arith.constant 0 : i32
    %c0_i32_0 = arith.constant 0 : i32
    %c0_i32_1 = arith.constant 0 : i32
    return %c0_i32, %c0_i32_0 : i32, i32
  }
  func.func @transform_4(%arg0: i32) -> (i32, i32) {
    %c0_i32 = arith.constant 0 : i32
    %c0_i32_0 = arith.constant 0 : i32
    %c0_i32_1 = arith.constant 0 : i32
    return %c0_i32, %c0_i32_0 : i32, i32
  }
  func.func @transform_5(%arg0: i32) -> (i32, i32) {
    %c0_i32 = arith.constant 0 : i32
    %c0_i32_0 = arith.constant 0 : i32
    return %arg0, %c0_i32 : i32, i32
  }
}

</mosaic_0001>

<llo_original>
// kernel: tpu_custom_call.1
$region0: #{tpu_custom_call.1}
  #allocation0 [shape = 'u32[]', space=smem, size = 0x4, offset = 0x4, fixed_abs, tag = 'smem constant byte address 0x4 - core index']
  #allocation1 [shape = 'u32[144,128]{1,0:T(1,128)}', space=vmem, size = 0x12000, scoped, tag = 'internal scratch']
  #allocation2 [shape = 'f32[1,1]{1,0:T(1,128)S(1)}', space=vmem, size = 0x200, scoped, tag = 'scoped memory for tpu_custom_call.1']
  %s0 = inlined_call_operand.vmem [shape: f32[128,200], index: 0, kind: input, shape index: {}]
  %s1 = inlined_call_operand.vmem [shape: bf16[200,128], index: 1, kind: input, shape index: {}]
  %s2 = inlined_call_operand.vmem [shape: f32[1,128], index: 2, kind: input, shape index: {}]
  %s3 = inlined_call_operand.vmem [shape: f32[1,128], index: 3, kind: input, shape index: {}]
  %s4 = inlined_call_operand.<no memory space> [shape: f32[1,1], index: 4, kind: input, shape index: {}]
  %s5 = inlined_call_operand.vmem [shape: f32[128,1], index: 5, kind: output, shape index: {}]
  %s6 = sld [smem:[#allocation0]]
  $region30: #{tpu_custom_call.1} parent=0
    _
  %s8 = ssub.s32 1, %s6
  %s9 = scalar_select 0, %s8, %s6
  %v10 = vstv %s4
  %11 = vst [vmem:[#allocation2] sm:$0x1] %v10
  // Predicated region
  $region2: #{tpu_custom_call.1} parent=0 // pred_check
    _
  $region3: #{tpu_custom_call.1} parent=0 // pred_check_branch
    %13 = sbr.rel (0) target = $region5
  $region4: #{tpu_custom_call.1} parent=0 // pred_region
    _
  $region5: #{tpu_custom_call.1} parent=0 // pred_fallthru
    _
  // Predicated region
  $region6: #{tpu_custom_call.1} parent=0 // pred_check
    _
  $region7: #{tpu_custom_call.1} parent=0 // pred_check_branch
    %15 = sbr.rel (0) target = $region9
  $region8: #{tpu_custom_call.1} parent=0 // pred_region
    _
  $region9: #{tpu_custom_call.1} parent=0 // pred_fallthru
    _
  // Predicated region
  $region10: #{tpu_custom_call.1} parent=0 // pred_check
    _
  $region11: #{tpu_custom_call.1} parent=0 // pred_check_branch
    %17 = sbr.rel (0) target = $region13
  $region12: #{tpu_custom_call.1} parent=0 // pred_region
    _
  $region13: #{tpu_custom_call.1} parent=0 // pred_fallthru
    _
  // Predicated region
  $region14: #{tpu_custom_call.1} parent=0 // pred_check
    _
  $region15: #{tpu_custom_call.1} parent=0 // pred_check_branch
    %19 = sbr.rel (0) target = $region17
  $region16: #{tpu_custom_call.1} parent=0 // pred_region
    _
  $region17: #{tpu_custom_call.1} parent=0 // pred_fallthru
    _
  // Predicated region
  $region18: #{tpu_custom_call.1} parent=0 // pred_check
    _
  $region19: #{tpu_custom_call.1} parent=0 // pred_check_branch
    %21 = sbr.rel (0) target = $region21
  $region20: #{tpu_custom_call.1} parent=0 // pred_region
    _
  $region21: #{tpu_custom_call.1} parent=0 // pred_fallthru
    _
  %v23 = vld [vmem:[%s0] sm:$0xff]
  %v24 = vld [vmem:[%s0 + $0x8] sm:$0xff]
  %v25 = vld [vmem:[%s0 + $0x10] sm:$0xff]
  %v26 = vld [vmem:[%s0 + $0x18] sm:$0xff]
  %v27 = vld [vmem:[%s0 + $0x20] sm:$0xff]
  %v28 = vld [vmem:[%s0 + $0x28] sm:$0xff]
  %v29 = vld [vmem:[%s0 + $0x30] sm:$0xff]
  %v30 = vld [vmem:[%s0 + $0x38] sm:$0xff]
  %v31 = vld [vmem:[%s0 + $0x40] sm:$0xff]
  %v32 = vld [vmem:[%s0 + $0x48] sm:$0xff]
  %v33 = vld [vmem:[%s0 + $0x50] sm:$0xff]
  %v34 = vld [vmem:[%s0 + $0x58] sm:$0xff]
  %v35 = vld [vmem:[%s0 + $0x60] sm:$0xff]
  %v36 = vld [vmem:[%s0 + $0x68] sm:$0xff]
  %v37 = vld [vmem:[%s0 + $0x70] sm:$0xff]
  %v38 = vld [vmem:[%s0 + $0x78] sm:$0xff]
  %v39 = vld [vmem:[%s0 + $0x80] sm:$0xff]
  %v40 = vld [vmem:[%s0 + $0x88] sm:$0xff]
  %v41 = vld [vmem:[%s0 + $0x90] sm:$0xff]
  %v42 = vld [vmem:[%s0 + $0x98] sm:$0xff]
  %v43 = vld [vmem:[%s0 + $0xa0] sm:$0xff]
  %v44 = vld [vmem:[%s0 + $0xa8] sm:$0xff]
  %v45 = vld [vmem:[%s0 + $0xb0] sm:$0xff]
  %v46 = vld [vmem:[%s0 + $0xb8] sm:$0xff]
  %v47 = vld [vmem:[%s0 + $0xc0] sm:$0xff]
  %v48 = vld [vmem:[%s0 + $0xc8] sm:$0xff]
  %v49 = vld [vmem:[%s0 + $0xd0] sm:$0xff]
  %v50 = vld [vmem:[%s0 + $0xd8] sm:$0xff]
  %v51 = vld [vmem:[%s0 + $0xe0] sm:$0xff]
  %v52 = vld [vmem:[%s0 + $0xe8] sm:$0xff]
  %v53 = vld [vmem:[%s0 + $0xf0] sm:$0xff]
  %v54 = vld [vmem:[%s0 + $0xf8] sm:$0xff]
  %v55 = vpack.c.bf16 %v25, %v23
  %v56 = vpack.c.bf16 %v26, %v24
  %v57 = vpack.c.bf16 %v29, %v27
  %v58 = vpack.c.bf16 %v30, %v28
  %v59 = vpack.c.bf16 %v33, %v31
  %v60 = vpack.c.bf16 %v34, %v32
  %v61 = vpack.c.bf16 %v37, %v35
  %v62 = vpack.c.bf16 %v38, %v36
  %v63 = vpack.c.bf16 %v41, %v39
  %v64 = vpack.c.bf16 %v42, %v40
  %v65 = vpack.c.bf16 %v45, %v43
  %v66 = vpack.c.bf16 %v46, %v44
  %v67 = vpack.c.bf16 %v49, %v47
  %v68 = vpack.c.bf16 %v50, %v48
  %v69 = vpack.c.bf16 %v53, %v51
  %v70 = vpack.c.bf16 %v54, %v52
  %v71 = vld [vmem:[%s1] sm:$0xf]
  %v72 = vld [vmem:[%s1 + $0x4] sm:$0xf]
  %v73 = vld [vmem:[%s1 + $0x8] sm:$0xf]
  %v74 = vld [vmem:[%s1 + $0xc] sm:$0xf]
  %v75 = vld [vmem:[%s1 + $0x10] sm:$0xf]
  %v76 = vld [vmem:[%s1 + $0x14] sm:$0xf]
  %v77 = vld [vmem:[%s1 + $0x18] sm:$0xf]
  %v78 = vld [vmem:[%s1 + $0x1c] sm:$0xf]
  %v79 = vld [vmem:[%s1 + $0x20] sm:$0xf]
  %v80 = vld [vmem:[%s1 + $0x24] sm:$0xf]
  %v81 = vld [vmem:[%s1 + $0x28] sm:$0xf]
  %v82 = vld [vmem:[%s1 + $0x2c] sm:$0xf]
  %v83 = vld [vmem:[%s1 + $0x30] sm:$0xf]
  %v84 = vld [vmem:[%s1 + $0x34] sm:$0xf]
  %v85 = vld [vmem:[%s1 + $0x38] sm:$0xf]
  %v86 = vld [vmem:[%s1 + $0x3c] sm:$0xf]
  %v87 = vld [vmem:[%s1 + $0x40] sm:$0xf]
  %v88 = vld [vmem:[%s1 + $0x44] sm:$0xf]
  %v89 = vld [vmem:[%s1 + $0x48] sm:$0xf]
  %v90 = vld [vmem:[%s1 + $0x4c] sm:$0xf]
  %v91 = vld [vmem:[%s1 + $0x50] sm:$0xf]
  %v92 = vld [vmem:[%s1 + $0x54] sm:$0xf]
  %v93 = vld [vmem:[%s1 + $0x58] sm:$0xf]
  %v94 = vld [vmem:[%s1 + $0x5c] sm:$0xf]
  %v95 = vld [vmem:[%s1 + $0x60] sm:$0xf]
  %v96 = vld [vmem:[%s2] sm:$0x1]
  %v98 = vlaneseq
  %v99 = vshrl.u32 %v98, 7
  %v100 = vsub.s32 0, %v99
  %v101 = vrot.slane %v96, %v100
  %v128 = vunpack.c.l.b16 %v71
  %v129 = vunpack.c.l.b16 %v72
  %v130 = vunpack.c.l.b16 %v73
  %v131 = vunpack.c.l.b16 %v74
  %v132 = vunpack.c.l.b16 %v75
  %v133 = vunpack.c.l.b16 %v76
  %v134 = vunpack.c.l.b16 %v77
  %v135 = vunpack.c.l.b16 %v78
  %v136 = vunpack.c.l.b16 %v79
  %v137 = vunpack.c.l.b16 %v80
  %v138 = vunpack.c.l.b16 %v81
  %v139 = vunpack.c.l.b16 %v82
  %v140 = vunpack.c.l.b16 %v83
  %v141 = vunpack.c.l.b16 %v84
  %v142 = vunpack.c.l.b16 %v85
  %v143 = vunpack.c.l.b16 %v86
  %v144 = vunpack.c.l.b16 %v87
  %v145 = vunpack.c.l.b16 %v88
  %v146 = vunpack.c.l.b16 %v89
  %v147 = vunpack.c.l.b16 %v90
  %v148 = vunpack.c.l.b16 %v91
  %v149 = vunpack.c.l.b16 %v92
  %v150 = vunpack.c.l.b16 %v93
  %v151 = vunpack.c.l.b16 %v94
  %v152 = vunpack.c.l.b16 %v95
  %v153 = vpack.c.b16 %v129, %v128
  %v154 = vpack.c.b16 %v131, %v130
  %v155 = vpack.c.b16 %v133, %v132
  %v156 = vpack.c.b16 %v135, %v134
  %v157 = vpack.c.b16 %v137, %v136
  %v158 = vpack.c.b16 %v139, %v138
  %v159 = vpack.c.b16 %v141, %v140
  %v160 = vpack.c.b16 %v143, %v142
  %v161 = vpack.c.b16 %v145, %v144
  %v162 = vpack.c.b16 %v147, %v146
  %v163 = vpack.c.b16 %v149, %v148
  %v164 = vpack.c.b16 %v151, %v150
  %v165 = vpack.c.b16 %v152, %v152
  %vm178 = vcmask 588800
  %v180 = vsel %vm178, %v56, 0
  %v183 = vsel %vm178, %v58, 0
  %v186 = vsel %vm178, %v60, 0
  %v189 = vsel %vm178, %v62, 0
  %v192 = vsel %vm178, %v64, 0
  %v195 = vsel %vm178, %v66, 0
  %v198 = vsel %vm178, %v68, 0
  %v201 = vsel %vm178, %v70, 0
  %vm203 = vcmask 1043456
  %v205 = vsel %vm203, %v165, 0
  %207 = vmatprep.subr.bf16.mxu0 0
  %208 = vmatpush1.bf16.msra.mxu0 %v160
  %209 = vmatprep.subr.bf16.mxu0 0
  %210 = vmatpush1.bf16.msra.mxu0 %v159
  %211 = vmatprep.subr.bf16.mxu0 0
  %212 = vmatpush1.bf16.msra.mxu0 %v158
  %213 = vmatprep.subr.bf16.mxu0 0
  %214 = vmatpush1.bf16.msra.mxu0 %v157
  %215 = vmatprep.subr.bf16.mxu0 0
  %216 = vmatpush1.bf16.msra.mxu0 %v156
  %217 = vmatprep.subr.bf16.mxu0 0
  %218 = vmatpush1.bf16.msra.mxu0 %v155
  %219 = vmatprep.subr.bf16.mxu0 0
  %220 = vmatpush1.bf16.msra.mxu0 %v154
  %221 = vmatprep.subr.bf16.mxu0 0
  %222 = vmatpush1.bf16.msra.mxu0 %v153
  %223 = vmatprep.subr.bf16.mxu0 0
  %224 = vmatpush2.bf16.msra.mxu0 0
  %225 = vmatprep.subr.bf16.mxu0 0
  %226 = vmatpush2.bf16.msra.mxu0 0
  %227 = vmatprep.subr.bf16.mxu0 0
  %228 = vmatpush2.bf16.msra.mxu0 0
  %229 = vmatprep.subr.bf16.mxu0 0
  %230 = vmatpush2.bf16.msra.mxu0 %v205
  %231 = vmatprep.subr.bf16.mxu0 0
  %232 = vmatpush2.bf16.msra.mxu0 %v164
  %233 = vmatprep.subr.bf16.mxu0 0
  %234 = vmatpush2.bf16.msra.mxu0 %v163
  %235 = vmatprep.subr.bf16.mxu0 0
  %236 = vmatpush2.bf16.msra.mxu0 %v162
  %237 = vmatprep.subr.bf16.mxu0 0
  %238 = vmatpush2.bf16.msra.mxu0 %v161
  %239 = vmatprep.mubr.bf16.mxu0 %v180
  %240 = vmatmul.mubr.bf16.gmra.mxu0 %v55
  %v241 = vpop.f32.mrf.mxu0
  %v242 = vadd.f32 %v101, %v241
  %v243 = vpop.f32.mrf.mxu0
  %v244 = vpop.f32.mrf.mxu0
  %v245 = vadd.f32 %v101, %v244
  %v246 = vpop.f32.mrf.mxu0
  %247 = vmatprep.mubr.bf16.mxu0 %v183
  %248 = vmatmul.mubr.bf16.gmra.mxu0 %v57
  %v249 = vpop.f32.mrf.mxu0
  %v250 = vadd.f32 %v101, %v249
  %v251 = vpop.f32.mrf.mxu0
  %v252 = vpop.f32.mrf.mxu0
  %v253 = vadd.f32 %v101, %v252
  %v254 = vpop.f32.mrf.mxu0
  %255 = vmatprep.mubr.bf16.mxu0 %v186
  %256 = vmatmul.mubr.bf16.gmra.mxu0 %v59
  %v257 = vpop.f32.mrf.mxu0
  %v258 = vadd.f32 %v101, %v257
  %v259 = vpop.f32.mrf.mxu0
  %v260 = vpop.f32.mrf.mxu0
  %v261 = vadd.f32 %v101, %v260
  %v262 = vpop.f32.mrf.mxu0
  %263 = vmatprep.mubr.bf16.mxu0 %v189
  %264 = vmatmul.mubr.bf16.gmra.mxu0 %v61
  %v265 = vpop.f32.mrf.mxu0
  %v266 = vadd.f32 %v101, %v265
  %v267 = vpop.f32.mrf.mxu0
  %v268 = vpop.f32.mrf.mxu0
  %v269 = vadd.f32 %v101, %v268
  %v270 = vpop.f32.mrf.mxu0
  %271 = vmatprep.mubr.bf16.mxu0 %v192
  %272 = vmatmul.mubr.bf16.gmra.mxu0 %v63
  %v273 = vpop.f32.mrf.mxu0
  %v274 = vadd.f32 %v101, %v273
  %v275 = vpop.f32.mrf.mxu0
  %v276 = vpop.f32.mrf.mxu0
  %v277 = vadd.f32 %v101, %v276
  %v278 = vpop.f32.mrf.mxu0
  %279 = vmatprep.mubr.bf16.mxu0 %v195
  %280 = vmatmul.mubr.bf16.gmra.mxu0 %v65
  %v281 = vpop.f32.mrf.mxu0
  %v282 = vadd.f32 %v101, %v281
  %v283 = vpop.f32.mrf.mxu0
  %v284 = vpop.f32.mrf.mxu0
  %v285 = vadd.f32 %v101, %v284
  %v286 = vpop.f32.mrf.mxu0
  %287 = vmatprep.mubr.bf16.mxu0 %v198
  %288 = vmatmul.mubr.bf16.gmra.mxu0 %v67
  %v289 = vpop.f32.mrf.mxu0
  %v290 = vadd.f32 %v101, %v289
  %v291 = vpop.f32.mrf.mxu0
  %v292 = vpop.f32.mrf.mxu0
  %v293 = vadd.f32 %v101, %v292
  %v294 = vpop.f32.mrf.mxu0
  %295 = vmatprep.mubr.bf16.mxu0 %v201
  %296 = vmatmul.mubr.bf16.gmra.mxu0 %v69
  %v297 = vpop.f32.mrf.mxu0
  %v298 = vadd.f32 %v101, %v297
  %v299 = vpop.f32.mrf.mxu0
  %v300 = vpop.f32.mrf.mxu0
  %v301 = vadd.f32 %v101, %v300
  %v302 = vpop.f32.mrf.mxu0
  %303 = vdwg.mxu0
  %v304 = vmul.f32 %v242, 0.1
  %v305 = vmul.f32 %v245, 0.1
  %v306 = vmul.f32 %v250, 0.1
  %v307 = vmul.f32 %v253, 0.1
  %v308 = vmul.f32 %v258, 0.1
  %v309 = vmul.f32 %v261, 0.1
  %v310 = vmul.f32 %v266, 0.1
  %v311 = vmul.f32 %v269, 0.1
  %v312 = vmul.f32 %v274, 0.1
  %v313 = vmul.f32 %v277, 0.1
  %v314 = vmul.f32 %v282, 0.1
  %v315 = vmul.f32 %v285, 0.1
  %v316 = vmul.f32 %v290, 0.1
  %v317 = vmul.f32 %v293, 0.1
  %v318 = vmul.f32 %v298, 0.1
  %v319 = vmul.f32 %v301, 0.1
  %v320 = vmax.f32 %v242, %v304
  %v321 = vmax.f32 %v245, %v305
  %v322 = vmax.f32 %v250, %v306
  %v323 = vmax.f32 %v253, %v307
  %v324 = vmax.f32 %v258, %v308
  %v325 = vmax.f32 %v261, %v309
  %v326 = vmax.f32 %v266, %v310
  %v327 = vmax.f32 %v269, %v311
  %v328 = vmax.f32 %v274, %v312
  %v329 = vmax.f32 %v277, %v313
  %v330 = vmax.f32 %v282, %v314
  %v331 = vmax.f32 %v285, %v315
  %v332 = vmax.f32 %v290, %v316
  %v333 = vmax.f32 %v293, %v317
  %v334 = vmax.f32 %v298, %v318
  %v335 = vmax.f32 %v301, %v319
  %v336 = vld [vmem:[%s3] sm:$0x1]
  %v338 = vlaneseq
  %v339 = vshrl.u32 %v338, 7
  %v340 = vsub.s32 0, %v339
  %v341 = vrot.slane %v336, %v340
  %v343 = vmul.f32 %v320, %v341
  %v344 = vmul.f32 %v321, %v341
  %v345 = vmul.f32 %v322, %v341
  %v346 = vmul.f32 %v323, %v341
  %v347 = vmul.f32 %v324, %v341
  %v348 = vmul.f32 %v325, %v341
  %v349 = vmul.f32 %v326, %v341
  %v350 = vmul.f32 %v327, %v341
  %v351 = vmul.f32 %v328, %v341
  %v352 = vmul.f32 %v329, %v341
  %v353 = vmul.f32 %v330, %v341
  %v354 = vmul.f32 %v331, %v341
  %v355 = vmul.f32 %v332, %v341
  %v356 = vmul.f32 %v333, %v341
  %v357 = vmul.f32 %v334, %v341
  %v358 = vmul.f32 %v335, %v341
  %359 = vadd.xlane.f32.xlu0 %v343
  %v360 = vpop.xlane.xlu0 %359
  %361 = vadd.xlane.f32.xlu0 %v344
  %v362 = vpop.xlane.xlu0 %361
  %363 = vadd.xlane.f32.xlu0 %v345
  %v364 = vpop.xlane.xlu0 %363
  %365 = vadd.xlane.f32.xlu0 %v346
  %v366 = vpop.xlane.xlu0 %365
  %367 = vadd.xlane.f32.xlu0 %v347
  %v368 = vpop.xlane.xlu0 %367
  %369 = vadd.xlane.f32.xlu0 %v348
  %v370 = vpop.xlane.xlu0 %369
  %371 = vadd.xlane.f32.xlu0 %v349
  %v372 = vpop.xlane.xlu0 %371
  %373 = vadd.xlane.f32.xlu0 %v350
  %v374 = vpop.xlane.xlu0 %373
  %375 = vadd.xlane.f32.xlu0 %v351
  %v376 = vpop.xlane.xlu0 %375
  %377 = vadd.xlane.f32.xlu0 %v352
  %v378 = vpop.xlane.xlu0 %377
  %379 = vadd.xlane.f32.xlu0 %v353
  %v380 = vpop.xlane.xlu0 %379
  %381 = vadd.xlane.f32.xlu0 %v354
  %v382 = vpop.xlane.xlu0 %381
  %383 = vadd.xlane.f32.xlu0 %v355
  %v384 = vpop.xlane.xlu0 %383
  %385 = vadd.xlane.f32.xlu0 %v356
  %v386 = vpop.xlane.xlu0 %385
  %387 = vadd.xlane.f32.xlu0 %v357
  %v388 = vpop.xlane.xlu0 %387
  %389 = vadd.xlane.f32.xlu0 %v358
  %v390 = vpop.xlane.xlu0 %389
  %v391 = vld [vmem:[#allocation2] sm:$0x1]
  %v393 = vlaneseq
  %v394 = vshrl.u32 %v393, 7
  %v395 = vsub.s32 0, %v394
  %v396 = vrot.slane %v391, %v395
  %v398 = vadd.f32 %v360, %v396
  %v399 = vadd.f32 %v362, %v396
  %v400 = vadd.f32 %v364, %v396
  %v401 = vadd.f32 %v366, %v396
  %v402 = vadd.f32 %v368, %v396
  %v403 = vadd.f32 %v370, %v396
  %v404 = vadd.f32 %v372, %v396
  %v405 = vadd.f32 %v374, %v396
  %v406 = vadd.f32 %v376, %v396
  %v407 = vadd.f32 %v378, %v396
  %v408 = vadd.f32 %v380, %v396
  %v409 = vadd.f32 %v382, %v396
  %v410 = vadd.f32 %v384, %v396
  %v411 = vadd.f32 %v386, %v396
  %v412 = vadd.f32 %v388, %v396
  %v413 = vadd.f32 %v390, %v396
  %v414 = vxor.u32 %v398, 2147483648
  %v415 = vxor.u32 %v399, 2147483648
  %v416 = vxor.u32 %v400, 2147483648
  %v417 = vxor.u32 %v401, 2147483648
  %v418 = vxor.u32 %v402, 2147483648
  %v419 = vxor.u32 %v403, 2147483648
  %v420 = vxor.u32 %v404, 2147483648
  %v421 = vxor.u32 %v405, 2147483648
  %v422 = vxor.u32 %v406, 2147483648
  %v423 = vxor.u32 %v407, 2147483648
  %v424 = vxor.u32 %v408, 2147483648
  %v425 = vxor.u32 %v409, 2147483648
  %v426 = vxor.u32 %v410, 2147483648
  %v427 = vxor.u32 %v411, 2147483648
  %v428 = vxor.u32 %v412, 2147483648
  %v429 = vxor.u32 %v413, 2147483648
  %v430 = vmul.f32 %v414, 1.442695
  %v431 = vpow.pop %v430
  %v432 = vmul.f32 %v415, 1.442695
  %v433 = vpow.pop %v432
  %v434 = vmul.f32 %v416, 1.442695
  %v435 = vpow.pop %v434
  %v436 = vmul.f32 %v417, 1.442695
  %v437 = vpow.pop %v436
  %v438 = vmul.f32 %v418, 1.442695
  %v439 = vpow.pop %v438
  %v440 = vmul.f32 %v419, 1.442695
  %v441 = vpow.pop %v440
  %v442 = vmul.f32 %v420, 1.442695
  %v443 = vpow.pop %v442
  %v444 = vmul.f32 %v421, 1.442695
  %v445 = vpow.pop %v444
  %v446 = vmul.f32 %v422, 1.442695
  %v447 = vpow.pop %v446
  %v448 = vmul.f32 %v423, 1.442695
  %v449 = vpow.pop %v448
  %v450 = vmul.f32 %v424, 1.442695
  %v451 = vpow.pop %v450
  %v452 = vmul.f32 %v425, 1.442695
  %v453 = vpow.pop %v452
  %v454 = vmul.f32 %v426, 1.442695
  %v455 = vpow.pop %v454
  %v456 = vmul.f32 %v427, 1.442695
  %v457 = vpow.pop %v456
  %v458 = vmul.f32 %v428, 1.442695
  %v459 = vpow.pop %v458
  %v460 = vmul.f32 %v429, 1.442695
  %v461 = vpow.pop %v460
  %v462 = vadd.f32 %v431, 1.0
  %v463 = vadd.f32 %v433, 1.0
  %v464 = vadd.f32 %v435, 1.0
  %v465 = vadd.f32 %v437, 1.0
  %v466 = vadd.f32 %v439, 1.0
  %v467 = vadd.f32 %v441, 1.0
  %v468 = vadd.f32 %v443, 1.0
  %v469 = vadd.f32 %v445, 1.0
  %v470 = vadd.f32 %v447, 1.0
  %v471 = vadd.f32 %v449, 1.0
  %v472 = vadd.f32 %v451, 1.0
  %v473 = vadd.f32 %v453, 1.0
  %v474 = vadd.f32 %v455, 1.0
  %v475 = vadd.f32 %v457, 1.0
  %v476 = vadd.f32 %v459, 1.0
  %v477 = vadd.f32 %v461, 1.0
  %v478 = vrcp.pop %v462
  %v479 = vmul.f32 1.0, %v478
  %v480 = vrcp.pop %v463
  %v481 = vmul.f32 1.0, %v480
  %v482 = vrcp.pop %v464
  %v483 = vmul.f32 1.0, %v482
  %v484 = vrcp.pop %v465
  %v485 = vmul.f32 1.0, %v484
  %v486 = vrcp.pop %v466
  %v487 = vmul.f32 1.0, %v486
  %v488 = vrcp.pop %v467
  %v489 = vmul.f32 1.0, %v488
  %v490 = vrcp.pop %v468
  %v491 = vmul.f32 1.0, %v490
  %v492 = vrcp.pop %v469
  %v493 = vmul.f32 1.0, %v492
  %v494 = vrcp.pop %v470
  %v495 = vmul.f32 1.0, %v494
  %v496 = vrcp.pop %v471
  %v497 = vmul.f32 1.0, %v496
  %v498 = vrcp.pop %v472
  %v499 = vmul.f32 1.0, %v498
  %v500 = vrcp.pop %v473
  %v501 = vmul.f32 1.0, %v500
  %v502 = vrcp.pop %v474
  %v503 = vmul.f32 1.0, %v502
  %v504 = vrcp.pop %v475
  %v505 = vmul.f32 1.0, %v504
  %v506 = vrcp.pop %v476
  %v507 = vmul.f32 1.0, %v506
  %v508 = vrcp.pop %v477
  %v509 = vmul.f32 1.0, %v508
  %vm510 = vcmask 7168
  %511 = vst.msk [vmem:[%s5] sm:$0xff] %vm510, %v479
  %512 = vst.msk [vmem:[%s5 + $0x8] sm:$0xff] %vm510, %v481
  %513 = vst.msk [vmem:[%s5 + $0x10] sm:$0xff] %vm510, %v483
  %514 = vst.msk [vmem:[%s5 + $0x18] sm:$0xff] %vm510, %v485
  %515 = vst.msk [vmem:[%s5 + $0x20] sm:$0xff] %vm510, %v487
  %516 = vst.msk [vmem:[%s5 + $0x28] sm:$0xff] %vm510, %v489
  %517 = vst.msk [vmem:[%s5 + $0x30] sm:$0xff] %vm510, %v491
  %518 = vst.msk [vmem:[%s5 + $0x38] sm:$0xff] %vm510, %v493
  %519 = vst.msk [vmem:[%s5 + $0x40] sm:$0xff] %vm510, %v495
  %520 = vst.msk [vmem:[%s5 + $0x48] sm:$0xff] %vm510, %v497
  %521 = vst.msk [vmem:[%s5 + $0x50] sm:$0xff] %vm510, %v499
  %522 = vst.msk [vmem:[%s5 + $0x58] sm:$0xff] %vm510, %v501
  %523 = vst.msk [vmem:[%s5 + $0x60] sm:$0xff] %vm510, %v503
  %524 = vst.msk [vmem:[%s5 + $0x68] sm:$0xff] %vm510, %v505
  %525 = vst.msk [vmem:[%s5 + $0x70] sm:$0xff] %vm510, %v507
  %526 = vst.msk [vmem:[%s5 + $0x78] sm:$0xff] %vm510, %v509
  // Predicated region
  $region22: #{tpu_custom_call.1} parent=0 // pred_check
    _
  $region23: #{tpu_custom_call.1} parent=0 // pred_check_branch
    %528 = sbr.rel (0) target = $region25
  $region24: #{tpu_custom_call.1} parent=0 // pred_region
    _
  $region25: #{tpu_custom_call.1} parent=0 // pred_fallthru
    _
  // Predicated region
  $region26: #{tpu_custom_call.1} parent=0 // pred_check
    _
  $region27: #{tpu_custom_call.1} parent=0 // pred_check_branch
    %530 = sbr.rel (0) target = $region29
  $region28: #{tpu_custom_call.1} parent=0 // pred_region
    _
  $region29: #{tpu_custom_call.1} parent=0 // pred_fallthru
    _

</llo_original>
